<compile_context>
chip_gen: v7x
topology: tpu7x:2x2x1
jax: 0.10.0
libtpu: 0.0.40
codegen_flags: <defaults>
</compile_context>

<pallas_src>
import functools

import jax
import jax.numpy as jnp
from jax.experimental import pallas as pl
from jax.experimental.pallas import tpu as pltpu

LANE = 128                     # lane width
SUB = 8                        # f32 sublane count (vreg rows)
MAX_TILE_R = 2048              # tiled path: 2048*128*4B = 1 MiB per input per buffer
FAST_MAX_ROWS = 2048           # fused single-pass path for inputs up to 1 MiB per array
VMEM_LIMIT = 32 * 1024 * 1024  # safe on v5e (128 MiB phys), v6e (128), v7x (64)


def _cdiv(a, b):
    return -(-a // b)


def _round_up(x, m):
    return _cdiv(x, m) * m


def _grid_split():
    """2-way CORE_PARALLEL outer split on v7x (2 TensorCores); 1-way otherwise."""
    try:
        kind = jax.devices()[0].device_kind.lower()
    except Exception:  # pragma: no cover - defensive
        kind = ""
    if "v7" in kind and hasattr(pltpu, "CORE_PARALLEL"):
        return 2, (pltpu.CORE_PARALLEL, pltpu.ARBITRARY)
    return 1, ("arbitrary", "arbitrary")


# --------------------------------------------------------------------------
# Fused single-pass kernel (inputs fully resident in VMEM, one HBM read).
# --------------------------------------------------------------------------
def _fused_kernel(pred_ref, tgt_ref, sum_ref, cnt_ref, *, thresh):
    t = tgt_ref[...].astype(jnp.float32)
    p = pred_ref[...].astype(jnp.float32)
    mask = t > 0.0
    diff = jnp.abs(t - p)

    # delta = thresh * max over valid elements (diff >= 0, so 0 is a safe identity).
    masked_diff = jnp.where(mask, diff, 0.0)
    delta = jnp.float32(thresh) * jnp.max(masked_diff)
    inv_2delta = 0.5 / delta

    part1 = jnp.where(diff < delta, diff, 0.0)
    part2 = jnp.where(diff > delta, diff * diff, 0.0) * inv_2delta
    loss = jnp.where(mask, part1 + part2, 0.0)

    # Reduce only across rows (VPU-friendly); final 128-lane reduce is done in glue.
    sum_ref[...] = jnp.sum(loss, axis=0, keepdims=True)
    cnt_ref[...] = jnp.sum(mask.astype(jnp.float32), axis=0, keepdims=True)


# --------------------------------------------------------------------------
# Tiled two-pass kernels (streaming grid reduction for large inputs).
# --------------------------------------------------------------------------
def _stats_kernel(pred_ref, tgt_ref, max_ref, cnt_ref, *,
                  rows, tile_r, inner_blocks, needs_row_mask):
    c = pl.program_id(0)
    i = pl.program_id(1)

    @pl.when(i == 0)
    def _():
        max_ref[...] = jnp.zeros_like(max_ref)   # diffs >= 0 -> 0 is the max identity
        cnt_ref[...] = jnp.zeros_like(cnt_ref)

    t = tgt_ref[...].astype(jnp.float32)
    p = pred_ref[...].astype(jnp.float32)
    mask = t > 0.0
    if needs_row_mask:
        # Only compiled in when the last block is partial (or a clamped duplicate
        # block exists); uses the *unclamped* block index so duplicates contribute 0.
        blk = c * inner_blocks + i
        local_row = jax.lax.broadcasted_iota(jnp.int32, (tile_r, LANE), 0)
        mask = jnp.logical_and(mask, (blk * tile_r + local_row) < rows)
    diff = jnp.abs(t - p)

    md = jnp.where(mask, diff, 0.0).reshape(tile_r // SUB, SUB, LANE)
    cd = mask.astype(jnp.float32).reshape(tile_r // SUB, SUB, LANE)

    # Keep accumulators vreg-shaped (VPU only); final XLU reduce happens once in JAX.
    max_ref[...] = jnp.maximum(max_ref[...], jnp.max(md, axis=0))
    cnt_ref[...] = cnt_ref[...] + jnp.sum(cd, axis=0)


def _loss_kernel(delta_ref, pred_ref, tgt_ref, sum_ref, *,
                 rows, tile_r, inner_blocks, needs_row_mask):
    c = pl.program_id(0)
    i = pl.program_id(1)

    @pl.when(i == 0)
    def _():
        sum_ref[...] = jnp.zeros_like(sum_ref)

    delta = delta_ref[0]        # scalar from SMEM
    inv_2delta = delta_ref[1]   # 0.5 / delta (precomputed in glue, no vector divide)

    t = tgt_ref[...].astype(jnp.float32)
    p = pred_ref[...].astype(jnp.float32)
    mask = t > 0.0
    if needs_row_mask:
        blk = c * inner_blocks + i
        local_row = jax.lax.broadcasted_iota(jnp.int32, (tile_r, LANE), 0)
        mask = jnp.logical_and(mask, (blk * tile_r + local_row) < rows)
    diff = jnp.abs(t - p)

    part1 = jnp.where(diff < delta, diff, 0.0)
    part2 = jnp.where(diff > delta, diff * diff, 0.0) * inv_2delta
    loss = jnp.where(mask, part1 + part2, 0.0)

    sum_ref[...] = sum_ref[...] + jnp.sum(
        loss.reshape(tile_r // SUB, SUB, LANE), axis=0)


# --------------------------------------------------------------------------
# Wrapper.
# --------------------------------------------------------------------------
@functools.partial(jax.jit, static_argnames=("thresh",))
def masked_berhu_loss(pred, target, thresh=0.2):
    assert pred.ndim == target.ndim, "inconsistent dimensions"
    p = pred.reshape(-1)
    t = target.reshape(-1)
    n = p.shape[0]

    # Lane-aligned flat sizes (typical NCHW depth maps) are zero-copy bitcasts.
    # Only misaligned sizes pay a one-time pad copy; padded targets are 0 -> masked out.
    rem = n % LANE
    if rem:
        p = jnp.pad(p, (0, LANE - rem))
        t = jnp.pad(t, (0, LANE - rem))

    rows = p.shape[0] // LANE
    p2 = p.reshape(rows, LANE)
    t2 = t.reshape(rows, LANE)

    # ---------------- fast path: single fused pass, one HBM read ----------------
    if rows <= FAST_MAX_ROWS:
        vmem_spec = pl.BlockSpec(memory_space=pltpu.MemorySpace.VMEM)
        sum_row, cnt_row = pl.pallas_call(
            functools.partial(_fused_kernel, thresh=float(thresh)),
            out_shape=(jax.ShapeDtypeStruct((1, LANE), jnp.float32),
                       jax.ShapeDtypeStruct((1, LANE), jnp.float32)),
            in_specs=[vmem_spec, vmem_spec],
            out_specs=(vmem_spec, vmem_spec),
            compiler_params=pltpu.CompilerParams(vmem_limit_bytes=VMEM_LIMIT),
        )(p2, t2)
        return jnp.sum(sum_row) / jnp.sum(cnt_row)

    # ---------------- tiled path: two streaming grid reductions ----------------
    # TODO(synk): a VMEM-resident single-read path with in-kernel chunked loops
    # could also cover mid-size inputs (a few MiB); kept two-pass here for safety.
    n_splits, dimsem = _grid_split()

    real_blocks = max(1, _cdiv(rows, MAX_TILE_R))
    inner_blocks = _cdiv(real_blocks, n_splits)
    total_blocks = n_splits * inner_blocks
    # Balanced tiles: usually makes total_blocks * tile_r == rows exactly, which
    # compiles the row mask out of the kernels entirely.
    tile_r = _round_up(_cdiv(rows, total_blocks), SUB)
    needs_row_mask = (total_blocks * tile_r != rows)
    last_blk = _cdiv(rows, tile_r) - 1   # last block holding real data

    def tile_map(c, i):
        # Clamp keeps every DMA in-bounds; the unclamped-index row mask in the
        # kernel zeroes any duplicated/partial block's contribution.
        return (jnp.minimum(c * inner_blocks + i, last_blk), 0)

    grid = (n_splits, inner_blocks)
    tile_spec = pl.BlockSpec((tile_r, LANE), tile_map)
    acc_spec = pl.BlockSpec((SUB, LANE), lambda c, i: (c, 0))
    cparams = pltpu.CompilerParams(dimension_semantics=dimsem,
                                   vmem_limit_bytes=VMEM_LIMIT)
    kw = dict(rows=rows, tile_r=tile_r, inner_blocks=inner_blocks,
              needs_row_mask=needs_row_mask)

    # -------- pass 1: masked max(|t - p|) and masked count --------
    max_slab, cnt_slab = pl.pallas_call(
        functools.partial(_stats_kernel, **kw),
        out_shape=(jax.ShapeDtypeStruct((n_splits * SUB, LANE), jnp.float32),
                   jax.ShapeDtypeStruct((n_splits * SUB, LANE), jnp.float32)),
        grid=grid,
        in_specs=[tile_spec, tile_spec],
        out_specs=(acc_spec, acc_spec),
        compiler_params=cparams,
    )(p2, t2)

    max_diff = jnp.max(max_slab)
    cnt = jnp.sum(cnt_slab)

    delta = jnp.float32(thresh) * max_diff
    dvec = jnp.stack([delta, 0.5 / delta]).astype(jnp.float32)  # [delta, 1/(2*delta)]

    # -------- pass 2: masked sum of berHu loss --------
    sum_slab = pl.pallas_call(
        functools.partial(_loss_kernel, **kw),
        out_shape=jax.ShapeDtypeStruct((n_splits * SUB, LANE), jnp.float32),
        grid=grid,
        in_specs=[
            pl.BlockSpec(memory_space=pltpu.MemorySpace.SMEM),  # [delta, 0.5/delta]
            tile_spec,
            tile_spec,
        ],
        out_specs=acc_spec,
        compiler_params=cparams,
    )(dvec, p2, t2)

    return jnp.sum(sum_slab) / cnt


def _reference_loss(pred, target, thresh=0.2):
    """Pure-JAX reference mirroring the PyTorch forward (for validation)."""
    p = pred.reshape(-1).astype(jnp.float32)
    t = target.reshape(-1).astype(jnp.float32)
    mask = t > 0.0
    diff = jnp.abs(t - p)
    delta = thresh * jnp.max(jnp.where(mask, diff, -jnp.inf))
    part1 = jnp.where(diff < delta, diff, 0.0)
    sq = diff * diff - delta * delta
    part2 = (jnp.where(sq > 0.0, sq, -delta * delta) + delta * delta) / (2.0 * delta)
    loss = part1 + part2
    return jnp.sum(jnp.where(mask, loss, 0.0)) / jnp.sum(mask.astype(jnp.float32))


if __name__ == "__main__":
    key = jax.random.PRNGKey(0)

    # NCHW-style inputs like the PyTorch module (e.g. depth maps). Targets include
    # non-positive values so the validity mask is exercised. Shapes cover:
    #  - small lane-aligned input            -> fused single-pass path
    #  - non-lane-multiple input             -> pad + fused path
    #  - larger input, rows divide evenly    -> tiled two-pass path, mask compiled out
    #  - larger input, ragged rows           -> tiled two-pass path with row mask
    shapes = [(2, 4, 16, 16), (2, 3, 17, 13), (2, 4, 192, 192), (1, 1, 2051, 128)]
    for shape in shapes:
        key, k1, k2 = jax.random.split(key, 3)
        pred = jax.random.uniform(k1, shape, jnp.float32, minval=0.0, maxval=2.0)
        target = jax.random.uniform(k2, shape, jnp.float32, minval=-0.5, maxval=2.0)

        out = jax.block_until_ready(masked_berhu_loss(pred, target, thresh=0.2))
        ref = jax.block_until_ready(_reference_loss(pred, target, thresh=0.2))
        assert jnp.allclose(out, ref, rtol=1e-3, atol=1e-6), (shape, float(out), float(ref))

    print("KERNEL_OK")
</pallas_src>

<mosaic_0001>
module attributes {stable_mosaic.version = 11 : i64} {
  func.func @_fused_kernel(%arg0: memref<16x128xf32, #tpu.memory_space<vmem>>, %arg1: memref<16x128xf32, #tpu.memory_space<vmem>>, %arg2: memref<1x128xf32, #tpu.memory_space<vmem>>, %arg3: memref<1x128xf32, #tpu.memory_space<vmem>>) attributes {dimension_semantics = [], scalar_prefetch = 0 : i64, scratch_operands = 0 : i64, tpu.core_type = #tpu.core_type<tc>} {
    %c0 = arith.constant 0 : index
    %c0_0 = arith.constant 0 : index
    %0 = vector.load %arg1[%c0, %c0_0] : memref<16x128xf32, #tpu.memory_space<vmem>>, vector<16x128xf32>
    %c0_1 = arith.constant 0 : index
    %c0_2 = arith.constant 0 : index
    %1 = vector.load %arg0[%c0_1, %c0_2] : memref<16x128xf32, #tpu.memory_space<vmem>>, vector<16x128xf32>
    %cst = arith.constant 0.000000e+00 : f32
    %2 = vector.broadcast %cst : f32 to vector<16x128xf32>
    %3 = arith.cmpf ogt, %0, %2 : vector<16x128xf32>
    %4 = arith.subf %0, %1 : vector<16x128xf32>
    %5 = math.absf %4 : vector<16x128xf32>
    %cst_3 = arith.constant 0.000000e+00 : f32
    %6 = vector.broadcast %cst_3 : f32 to vector<16x128xf32>
    %7 = arith.select %3, %5, %6 : vector<16x128xi1>, vector<16x128xf32>
    %8 = vector.shape_cast %7 : vector<16x128xf32> to vector<1x16x128xf32>
    %cst_4 = arith.constant dense<0xFF800000> : vector<1xf32>
    %9 = vector.multi_reduction <maximumf>, %8, %cst_4 [1, 2] : vector<1x16x128xf32> to vector<1xf32>
    %10 = vector.shape_cast %9 : vector<1xf32> to vector<1x1x1xf32>
    %11 = vector.extract %10[0, 0, 0] : f32 from vector<1x1x1xf32>
    %cst_5 = arith.constant 2.000000e-01 : f32
    %12 = arith.mulf %cst_5, %11 : f32
    %cst_6 = arith.constant 5.000000e-01 : f32
    %13 = arith.divf %cst_6, %12 : f32
    %14 = vector.broadcast %12 : f32 to vector<16x128xf32>
    %15 = arith.cmpf olt, %5, %14 : vector<16x128xf32>
    %cst_7 = arith.constant 0.000000e+00 : f32
    %16 = vector.broadcast %cst_7 : f32 to vector<16x128xf32>
    %17 = arith.select %15, %5, %16 : vector<16x128xi1>, vector<16x128xf32>
    %18 = vector.broadcast %12 : f32 to vector<16x128xf32>
    %19 = arith.cmpf ogt, %5, %18 : vector<16x128xf32>
    %20 = arith.mulf %5, %5 : vector<16x128xf32>
    %cst_8 = arith.constant 0.000000e+00 : f32
    %21 = vector.broadcast %cst_8 : f32 to vector<16x128xf32>
    %22 = arith.select %19, %20, %21 : vector<16x128xi1>, vector<16x128xf32>
    %23 = vector.broadcast %13 : f32 to vector<16x128xf32>
    %24 = arith.mulf %22, %23 : vector<16x128xf32>
    %25 = arith.addf %17, %24 : vector<16x128xf32>
    %cst_9 = arith.constant 0.000000e+00 : f32
    %26 = vector.broadcast %cst_9 : f32 to vector<16x128xf32>
    %27 = arith.select %3, %25, %26 : vector<16x128xi1>, vector<16x128xf32>
    %cst_10 = arith.constant dense<0.000000e+00> : vector<128xf32>
    %28 = vector.multi_reduction <add>, %27, %cst_10 [0] : vector<16x128xf32> to vector<128xf32>
    %29 = vector.shape_cast %28 : vector<128xf32> to vector<1x128xf32>
    %c0_11 = arith.constant 0 : index
    %c0_12 = arith.constant 0 : index
    %30 = vector.load %arg2[%c0_11, %c0_12] : memref<1x128xf32, #tpu.memory_space<vmem>>, vector<1x128xf32>
    tpu.vector_store %arg2[%c0_11, %c0_12], %29 {strides = array<i32>} : memref<1x128xf32, #tpu.memory_space<vmem>>, vector<1x128xf32>,
    %31 = arith.extui %3 : vector<16x128xi1> to vector<16x128xi32>
    %32 = arith.sitofp %31 : vector<16x128xi32> to vector<16x128xf32>
    %cst_13 = arith.constant dense<0.000000e+00> : vector<128xf32>
    %33 = vector.multi_reduction <add>, %32, %cst_13 [0] : vector<16x128xf32> to vector<128xf32>
    %34 = vector.shape_cast %33 : vector<128xf32> to vector<1x128xf32>
    %c0_14 = arith.constant 0 : index
    %c0_15 = arith.constant 0 : index
    %35 = vector.load %arg3[%c0_14, %c0_15] : memref<1x128xf32, #tpu.memory_space<vmem>>, vector<1x128xf32>
    tpu.vector_store %arg3[%c0_14, %c0_15], %34 {strides = array<i32>} : memref<1x128xf32, #tpu.memory_space<vmem>>, vector<1x128xf32>,
    return
  }
}

</mosaic_0001>

<llo_original>
// kernel: masked_berhu_loss.1
$region0: #{masked_berhu_loss.1}
  #allocation0 [shape = 'u32[]', space=smem, size = 0x4, offset = 0x4, fixed_abs, tag = 'smem constant byte address 0x4 - core index']
  #allocation1 [shape = 'u32[144,128]{1,0:T(1,128)}', space=vmem, size = 0x12000, scoped, tag = 'internal scratch']
  %s0 = inlined_call_operand.vmem [shape: f32[16,128], index: 0, kind: input, shape index: {}]
  %s1 = inlined_call_operand.vmem [shape: f32[16,128], index: 1, kind: input, shape index: {}]
  %s2 = inlined_call_operand.vmem [shape: f32[1,128], index: 2, kind: output, shape index: {0}]
  %s3 = inlined_call_operand.vmem [shape: f32[1,128], index: 3, kind: output, shape index: {1}]
  %4 = xla_tuple %s2, %s3
  %s5 = sld [smem:[#allocation0]]
  $region26: #{masked_berhu_loss.1} parent=0
    _
  %s7 = ssub.s32 1, %s5
  %s8 = scalar_select 0, %s7, %s5
  // Predicated region
  $region2: #{masked_berhu_loss.1} parent=0 // pred_check
    _
  $region3: #{masked_berhu_loss.1} parent=0 // pred_check_branch
    %10 = sbr.rel (0) target = $region5
  $region4: #{masked_berhu_loss.1} parent=0 // pred_region
    _
  $region5: #{masked_berhu_loss.1} parent=0 // pred_fallthru
    _
  // Predicated region
  $region6: #{masked_berhu_loss.1} parent=0 // pred_check
    _
  $region7: #{masked_berhu_loss.1} parent=0 // pred_check_branch
    %12 = sbr.rel (0) target = $region9
  $region8: #{masked_berhu_loss.1} parent=0 // pred_region
    _
  $region9: #{masked_berhu_loss.1} parent=0 // pred_fallthru
    _
  %v13 = vld [vmem:[%s1] sm:$0xff]
  %v14 = vld [vmem:[%s1 + $0x8] sm:$0xff]
  %v15 = vld [vmem:[%s0] sm:$0xff]
  %v16 = vld [vmem:[%s0 + $0x8] sm:$0xff]
  %vm17 = vcmp.gt.f32.partialorder %v13, 0.0
  %vm18 = vcmp.gt.f32.partialorder %v14, 0.0
  %v19 = vsub.f32 %v13, %v15
  %v20 = vsub.f32 %v14, %v16
  %v21 = vand.u32 2147483647, %v19
  %v22 = vand.u32 2147483647, %v20
  %v23 = vsel %vm17, %v21, 0.0
  %v24 = vsel %vm18, %v22, 0.0
  %v25 = vmax.f32 %v23, %v24
  %26 = vmax.xlane.f32.xlu0 %v25
  %v27 = vpop.xlane.xlu0 %26
  %v28 = vrot.slane %v27, 4
  %v29 = vmax.f32 %v27, %v28
  %v30 = vrot.slane %v29, 2
  %v31 = vmax.f32 %v29, %v30
  %v32 = vrot.slane %v31, 1
  %v33 = vmax.f32 %v31, %v32
  %s34 = vtos %v33
  %s35 = smul.f32 %s34, 0.2
  %v36 = vstv %s35
  %v37 = vrcp.pop %v36
  %s38 = vtos %v37
  %s39 = smul.f32 0.5, %s38
  %v40 = vstv %s35
  %vm41 = vcmp.lt.f32.partialorder %v21, %v40
  %vm42 = vcmp.lt.f32.partialorder %v22, %v40
  %v43 = vsel %vm41, %v21, 0.0
  %v44 = vsel %vm42, %v22, 0.0
  %vm45 = vcmp.gt.f32.partialorder %v21, %v40
  %vm46 = vcmp.gt.f32.partialorder %v22, %v40
  %v47 = vmul.f32 %v21, %v21
  %v48 = vmul.f32 %v22, %v22
  %v49 = vsel %vm45, %v47, 0.0
  %v50 = vsel %vm46, %v48, 0.0
  %v51 = vstv %s39
  %v52 = vmul.f32 %v49, %v51
  %v53 = vmul.f32 %v50, %v51
  %v54 = vadd.f32 %v43, %v52
  %v55 = vadd.f32 %v44, %v53
  %v56 = vsel %vm17, %v54, 0.0
  %v57 = vsel %vm18, %v55, 0.0
  %v58 = vadd.f32 %v56, %v57
  %v59 = vrot.slane %v58, 4
  %v60 = vadd.f32 %v58, %v59
  %v61 = vrot.slane %v60, 2
  %v62 = vadd.f32 %v60, %v61
  %v63 = vrot.slane %v62, 1
  %v64 = vadd.f32 %v62, %v63
  %65 = vst [vmem:[%s2] sm:$0x1] %v64
  %v66 = vsel %vm17, 1, 0
  %v67 = vsel %vm18, 1, 0
  %v68 = vcvt.s32.f32 %v66
  %v69 = vcvt.s32.f32 %v67
  %v70 = vadd.f32 %v68, %v69
  %v71 = vrot.slane %v70, 4
  %v72 = vadd.f32 %v70, %v71
  %v73 = vrot.slane %v72, 2
  %v74 = vadd.f32 %v72, %v73
  %v75 = vrot.slane %v74, 1
  %v76 = vadd.f32 %v74, %v75
  %77 = vst [vmem:[%s3] sm:$0x1] %v76
  // Predicated region
  $region10: #{masked_berhu_loss.1} parent=0 // pred_check
    _
  $region11: #{masked_berhu_loss.1} parent=0 // pred_check_branch
    %79 = sbr.rel (0) target = $region13
  $region12: #{masked_berhu_loss.1} parent=0 // pred_region
    _
  $region13: #{masked_berhu_loss.1} parent=0 // pred_fallthru
    _
  // Predicated region
  $region14: #{masked_berhu_loss.1} parent=0 // pred_check
    _
  $region15: #{masked_berhu_loss.1} parent=0 // pred_check_branch
    %81 = sbr.rel (0) target = $region17
  $region16: #{masked_berhu_loss.1} parent=0 // pred_region
    _
  $region17: #{masked_berhu_loss.1} parent=0 // pred_fallthru
    _
  // Predicated region
  $region18: #{masked_berhu_loss.1} parent=0 // pred_check
    _
  $region19: #{masked_berhu_loss.1} parent=0 // pred_check_branch
    %83 = sbr.rel (0) target = $region21
  $region20: #{masked_berhu_loss.1} parent=0 // pred_region
    _
  $region21: #{masked_berhu_loss.1} parent=0 // pred_fallthru
    _
  // Predicated region
  $region22: #{masked_berhu_loss.1} parent=0 // pred_check
    _
  $region23: #{masked_berhu_loss.1} parent=0 // pred_check_branch
    %85 = sbr.rel (0) target = $region25
  $region24: #{masked_berhu_loss.1} parent=0 // pred_region
    _
  $region25: #{masked_berhu_loss.1} parent=0 // pred_fallthru
    _

</llo_original>
